<compile_context>
chip_gen: v7x
topology: tpu7x:2x2x1
jax: 0.10.0
libtpu: 0.0.40
codegen_flags: <defaults>
</compile_context>

<pallas_src>
import jax
import jax.numpy as jnp
from jax.experimental import pallas as pl
from jax.experimental.pallas import tpu as pltpu


# ----------------------------------------------------------------------------
# Helpers
# ----------------------------------------------------------------------------
def _round_up(x, m):
    return (x + m - 1) // m * m


def _pad2(a, rows, cols):
    return jnp.pad(a, ((0, rows - a.shape[0]), (0, cols - a.shape[1])))


def _vmem_capacity_bytes():
    """Physical VMEM of the local TPU; conservative 64 MiB if unknown."""
    try:
        return int(pltpu.get_tpu_info().vmem_capacity_bytes)
    except Exception:
        return 64 << 20


def _resident_bytes(tm, tk, hp, np_, resident_buf):
    """VMEM residency estimate for a (TM, TK) tile choice.

    resident_buf: buffer count applied to grid-invariant operands
    (1 when single-buffered via pl.Buffered(1), 2 for default pipelining).
    """
    return (
        2 * tk * hp * 2                    # W1 K-slab (bf16), double-buffered
        + resident_buf * hp * hp * 2       # W2 (bf16), resident
        + resident_buf * hp * np_ * 2      # W3 (bf16), resident
        + resident_buf * (2 * hp + np_) * 4  # biases (f32), resident
        + 2 * tm * tk * 2                  # x tile (bf16), double-buffered
        + 2 * tm * np_ * 4                 # out tile (f32), double-buffered
        + tm * hp * 4                      # fc1 f32 accumulator scratch
        + 3 * tm * hp * 4                  # h1/h2 live intermediates headroom
    )


def _choose_tiles(batch, dp, hp, np_, budget, resident_buf):
    """Pick (TM, TK) that fits the VMEM budget; biggest first."""
    tk_cands = [tk for tk in (512, 256, 128) if tk <= dp and dp % tk == 0]
    if not tk_cands:
        tk_cands = [dp]
    if batch >= 512:
        tm_cands = [512, 256, 128]
    elif batch >= 256:
        tm_cands = [256, 128]
    else:
        # bf16 packs 16 rows per sublane group -> keep x vregs full.
        tm_cands = [max(16, _round_up(batch, 16))]
    for tm in tm_cands:
        for tk in tk_cands:
            if _resident_bytes(tm, tk, hp, np_, resident_buf) <= budget:
                return tm, tk
    return tm_cands[-1], tk_cands[-1]


# ----------------------------------------------------------------------------
# Kernel
# ----------------------------------------------------------------------------
def _mlp_kernel(x_ref, w1_ref, b1_ref, w2_ref, b2_ref, w3_ref, b3_ref,
                o_ref, acc_ref):
    # Grid = (batch tiles, K tiles over input_dim); fc1 accumulates over K.
    k = pl.program_id(1)

    @pl.when(k == 0)
    def _():
        acc_ref[...] = jnp.zeros_like(acc_ref)

    # fc1 partial: (TM, TK)bf16 @ (TK, Hp)bf16 -> f32 accumulation on MXU.
    acc_ref[...] += jnp.dot(x_ref[...], w1_ref[...],
                            preferred_element_type=jnp.float32)

    @pl.when(k == pl.num_programs(1) - 1)
    def _():
        # Bias + ReLU in f32.  Dropout(p=0.5) -> identity in eval mode.
        h1 = jnp.maximum(acc_ref[...] + b1_ref[...], 0.0)
        # fc2: bf16 operands, f32 accumulation.
        h2 = jnp.dot(h1.astype(jnp.bfloat16), w2_ref[...],
                     preferred_element_type=jnp.float32)
        h2 = jnp.maximum(h2 + b2_ref[...], 0.0)
        # fc3: logits into a lane-dense (128-padded) output tile.
        out = jnp.dot(h2.astype(jnp.bfloat16), w3_ref[...],
                      preferred_element_type=jnp.float32)
        o_ref[...] = (out + b3_ref[...]).astype(o_ref.dtype)


# ----------------------------------------------------------------------------
# Parameter preparation (hoisted out of the per-call path)
# ----------------------------------------------------------------------------
def prepare_params(params):
    """Pad to lane-aligned shapes and cast weights to bf16 ONCE."""
    w1, b1, w2, b2, w3, b3 = params
    d, h = w1.shape
    out_dim = w3.shape[1]
    lane = 128
    dp = _round_up(d, lane)
    hp = _round_up(h, lane)
    np_ = _round_up(out_dim, lane)
    f32, bf16 = jnp.float32, jnp.bfloat16
    # Zero-padding keeps semantics exact: padded input cols / hidden units /
    # output cols contribute nothing and are sliced off after the kernel.
    return dict(
        w1=_pad2(w1, dp, hp).astype(bf16),
        b1=_pad2(b1.astype(f32).reshape(1, -1), 1, hp),
        w2=_pad2(w2, hp, hp).astype(bf16),
        b2=_pad2(b2.astype(f32).reshape(1, -1), 1, hp),
        w3=_pad2(w3, hp, np_).astype(bf16),
        b3=_pad2(b3.astype(f32).reshape(1, -1), 1, np_),
        input_dim=d, hidden_dim=h, out_dim=out_dim,
        Dp=dp, Hp=hp, Np=np_,
    )


# ----------------------------------------------------------------------------
# pallas_call builder + forward wrapper
# ----------------------------------------------------------------------------
def _run_pallas(xp, prep, tm, tk, bp, vmem_limit, cost_est, single_buffer):
    dp, hp, np_ = prep["Dp"], prep["Hp"], prep["Np"]

    def resident_spec(shape):
        # Grid-invariant operand: constant index_map keeps it VMEM-resident;
        # Buffered(1) allocates a single copy instead of the default pair.
        if single_buffer:
            return pl.BlockSpec(shape, lambda i, k: (0, 0),
                                pipeline_mode=pl.Buffered(buffer_count=1))
        return pl.BlockSpec(shape, lambda i, k: (0, 0))

    return pl.pallas_call(
        _mlp_kernel,
        out_shape=jax.ShapeDtypeStruct((bp, np_), jnp.float32),
        grid_spec=pltpu.PrefetchScalarGridSpec(
            num_scalar_prefetch=0,
            grid=(bp // tm, dp // tk),
            in_specs=[
                pl.BlockSpec((tm, tk), lambda i, k: (i, k)),   # x (streamed)
                pl.BlockSpec((tk, hp), lambda i, k: (k, 0)),   # W1 (K-slabs)
                resident_spec((1, hp)),                        # b1
                resident_spec((hp, hp)),                       # W2
                resident_spec((1, hp)),                        # b2
                resident_spec((hp, np_)),                      # W3
                resident_spec((1, np_)),                       # b3
            ],
            out_specs=pl.BlockSpec((tm, np_), lambda i, k: (i, 0)),
            scratch_shapes=[pltpu.VMEM((tm, hp), jnp.float32)],
        ),
        compiler_params=pltpu.CompilerParams(
            dimension_semantics=("parallel", "arbitrary"),
            vmem_limit_bytes=vmem_limit,
        ),
        cost_estimate=cost_est,
    )(xp, prep["w1"], prep["b1"], prep["w2"], prep["b2"],
      prep["w3"], prep["b3"])


def rcnn_classifier_forward(x, prep):
    """x: [B, input_dim] float32; prep: output of prepare_params().

    Returns [B, num_classes+1] float32 class scores.
    """
    b, d = x.shape
    assert d == prep["input_dim"], (d, prep["input_dim"])
    dp, hp, np_ = prep["Dp"], prep["Hp"], prep["Np"]

    use_single = hasattr(pl, "Buffered")
    resident_buf = 1 if use_single else 2

    # Generation-aware VMEM budget (v7x: 64 MiB, v5e/v6e: 128 MiB).
    vmem_cap = _vmem_capacity_bytes()
    budget = max(vmem_cap - (8 << 20), 16 << 20)
    tm, tk = _choose_tiles(b, dp, hp, np_, budget, resident_buf)
    bp = _round_up(b, tm)

    resident = _resident_bytes(tm, tk, hp, np_, resident_buf)
    vmem_limit = int(min(max(resident + (4 << 20), 16 << 20),
                         vmem_cap - (4 << 20)))

    # Per-call input prep (x changes every call; weights were prepped once).
    xp = _pad2(x, bp, dp).astype(jnp.bfloat16)

    # Advisory cost estimate for XLA's scheduler.
    n_batch_tiles = bp // tm
    cost_est = pl.CostEstimate(
        flops=int(2 * bp * (dp * hp + hp * hp + hp * np_)),
        transcendentals=0,
        bytes_accessed=int(
            bp * dp * 2                      # x
            + dp * hp * 2 * n_batch_tiles    # W1 re-streamed per batch tile
            + hp * hp * 2 + hp * np_ * 2     # W2, W3
            + (2 * hp + np_) * 4             # biases
            + bp * np_ * 4                   # out
        ),
    )

    try:
        out_padded = _run_pallas(xp, prep, tm, tk, bp, vmem_limit, cost_est,
                                 single_buffer=use_single)
    except Exception:
        # Fallback for Pallas builds where Buffered(1) is not accepted on
        # pallas_call BlockSpecs; identical semantics, larger VMEM footprint.
        tm, tk = _choose_tiles(b, dp, hp, np_, budget, resident_buf=2)
        bp = _round_up(b, tm)
        xp = _pad2(x, bp, dp).astype(jnp.bfloat16)
        vmem_limit = int(min(max(_resident_bytes(tm, tk, hp, np_, 2)
                                 + (4 << 20), 16 << 20),
                             vmem_cap - (4 << 20)))
        out_padded = _run_pallas(xp, prep, tm, tk, bp, vmem_limit, cost_est,
                                 single_buffer=False)

    return out_padded[:b, :prep["out_dim"]]


# ----------------------------------------------------------------------------
# Init (mirrors RCNNClassifier._init_weights) and pure-JAX reference
# ----------------------------------------------------------------------------
def init_params(key, input_dim, hidden_dim, num_classes):
    """Xavier-normal weights, bias=0.1 — mirrors the PyTorch module."""
    def xavier_normal(k, fan_in, fan_out):
        std = (2.0 / (fan_in + fan_out)) ** 0.5
        # stored as [in, out] (transposed vs. PyTorch nn.Linear.weight)
        return std * jax.random.normal(k, (fan_in, fan_out), dtype=jnp.float32)

    k1, k2, k3 = jax.random.split(key, 3)
    out_dim = num_classes + 1
    w1 = xavier_normal(k1, input_dim, hidden_dim)
    b1 = jnp.full((1, hidden_dim), 0.1, dtype=jnp.float32)
    w2 = xavier_normal(k2, hidden_dim, hidden_dim)
    b2 = jnp.full((1, hidden_dim), 0.1, dtype=jnp.float32)
    w3 = xavier_normal(k3, hidden_dim, out_dim)
    b3 = jnp.full((1, out_dim), 0.1, dtype=jnp.float32)
    return (w1, b1, w2, b2, w3, b3)


def _reference_forward(x, params):
    """Pure-JAX reference with the same bf16-operand / f32-accum scheme."""
    w1, b1, w2, b2, w3, b3 = params
    bf16 = jnp.bfloat16

    def mm(a, b):
        return jnp.dot(a.astype(bf16), b.astype(bf16),
                       preferred_element_type=jnp.float32)

    h1 = jnp.maximum(mm(x, w1) + b1, 0.0)
    h2 = jnp.maximum(mm(h1, w2) + b2, 0.0)
    return mm(h2, w3) + b3


# ----------------------------------------------------------------------------
# Self-test at small shapes
# ----------------------------------------------------------------------------
if __name__ == "__main__":
    # Small shapes consistent with the module: batch=2, input_dim=128,
    # hidden_dim=128, num_classes=20 -> output dim 21.
    batch, input_dim, hidden_dim, num_classes = 2, 128, 128, 20

    key = jax.random.PRNGKey(0)
    kx, kp = jax.random.split(key)
    x = jax.random.normal(kx, (batch, input_dim), dtype=jnp.float32)
    params = init_params(kp, input_dim, hidden_dim, num_classes)

    prep = prepare_params(params)           # one-time pad + bf16 cast
    out = rcnn_classifier_forward(x, prep)
    out = jax.block_until_ready(out)

    ref = _reference_forward(x, params)
    assert out.shape == (batch, num_classes + 1), out.shape
    assert jnp.allclose(out, ref, atol=5e-2, rtol=5e-2), "mismatch vs reference"

    print("KERNEL_OK")
</pallas_src>

<mosaic_0001>
module attributes {stable_mosaic.version = 11 : i64} {
  func.func @_mlp_kernel(%arg0: i32, %arg1: i32, %arg2: memref<16x128xbf16, #tpu.memory_space<vmem>>, %arg3: memref<128x128xbf16, #tpu.memory_space<vmem>>, %arg4: memref<1x128xf32, #tpu.memory_space<vmem>>, %arg5: memref<128x128xbf16, #tpu.memory_space<vmem>>, %arg6: memref<1x128xf32, #tpu.memory_space<vmem>>, %arg7: memref<128x128xbf16, #tpu.memory_space<vmem>>, %arg8: memref<1x128xf32, #tpu.memory_space<vmem>>, %arg9: memref<16x128xf32, #tpu.memory_space<vmem>>, %arg10: memref<16x128xf32, #tpu.memory_space<vmem>>) attributes {dimension_semantics = [#tpu.dimension_semantics<parallel>, #tpu.dimension_semantics<arbitrary>], iteration_bounds = array<i64: 1, 1>, scalar_prefetch = 0 : i64, scratch_operands = 1 : i64, tpu.core_type = #tpu.core_type<tc>, window_params = [{transform_indices = @transform_0, window_bounds = array<i64: 16, 128>}, {transform_indices = @transform_1, window_bounds = array<i64: 128, 128>}, {pipeline_mode = #tpu.pipeline_mode<synchronous>, transform_indices = @transform_2, window_bounds = array<i64: 1, 128>}, {pipeline_mode = #tpu.pipeline_mode<synchronous>, transform_indices = @transform_3, window_bounds = array<i64: 128, 128>}, {pipeline_mode = #tpu.pipeline_mode<synchronous>, transform_indices = @transform_4, window_bounds = array<i64: 1, 128>}, {pipeline_mode = #tpu.pipeline_mode<synchronous>, transform_indices = @transform_5, window_bounds = array<i64: 128, 128>}, {pipeline_mode = #tpu.pipeline_mode<synchronous>, transform_indices = @transform_6, window_bounds = array<i64: 1, 128>}, {transform_indices = @transform_7, window_bounds = array<i64: 16, 128>}]} {
    %c0_i32 = arith.constant 0 : i32
    %0 = arith.cmpi eq, %arg1, %c0_i32 : i32
    %1 = arith.extui %0 : i1 to i32
    %c0_i32_0 = arith.constant 0 : i32
    %2 = arith.cmpi ne, %1, %c0_i32_0 : i32
    scf.if %2 {
      %cst_10 = arith.constant 0.000000e+00 : f32
      %12 = vector.broadcast %cst_10 : f32 to vector<16x128xf32>
      %c0_11 = arith.constant 0 : index
      %c0_12 = arith.constant 0 : index
      %13 = vector.load %arg10[%c0_11, %c0_12] : memref<16x128xf32, #tpu.memory_space<vmem>>, vector<16x128xf32>
      tpu.vector_store %arg10[%c0_11, %c0_12], %12 {strides = array<i32>} : memref<16x128xf32, #tpu.memory_space<vmem>>, vector<16x128xf32>,
    } else {
    }
    %c0 = arith.constant 0 : index
    %c0_1 = arith.constant 0 : index
    %3 = vector.load %arg10[%c0, %c0_1] : memref<16x128xf32, #tpu.memory_space<vmem>>, vector<16x128xf32>
    %c0_2 = arith.constant 0 : index
    %c0_3 = arith.constant 0 : index
    %4 = vector.load %arg2[%c0_2, %c0_3] : memref<16x128xbf16, #tpu.memory_space<vmem>>, vector<16x128xbf16>
    %c0_4 = arith.constant 0 : index
    %c0_5 = arith.constant 0 : index
    %5 = vector.load %arg3[%c0_4, %c0_5] : memref<128x128xbf16, #tpu.memory_space<vmem>>, vector<128x128xbf16>
    %cst = arith.constant dense<0.000000e+00> : vector<16x128xf32>
    %6 = tpu.matmul %4, %5, %cst {dimension_numbers = #tpu.dot_dimension_numbers<[1], [0], [0], [1], [0, 0, 1, 1], [], []>} : vector<16x128xbf16>, vector<128x128xbf16>, vector<16x128xf32> -> vector<16x128xf32>
    %7 = arith.addf %3, %6 : vector<16x128xf32>
    %c0_6 = arith.constant 0 : index
    %c0_7 = arith.constant 0 : index
    %8 = vector.load %arg10[%c0_6, %c0_7] : memref<16x128xf32, #tpu.memory_space<vmem>>, vector<16x128xf32>
    tpu.vector_store %arg10[%c0_6, %c0_7], %7 {strides = array<i32>} : memref<16x128xf32, #tpu.memory_space<vmem>>, vector<16x128xf32>,
    %c0_i32_8 = arith.constant 0 : i32
    %9 = arith.cmpi eq, %arg1, %c0_i32_8 : i32
    %10 = arith.extui %9 : i1 to i32
    %c0_i32_9 = arith.constant 0 : i32
    %11 = arith.cmpi ne, %10, %c0_i32_9 : i32
    scf.if %11 {
      %c0_10 = arith.constant 0 : index
      %c0_11 = arith.constant 0 : index
      %12 = vector.load %arg10[%c0_10, %c0_11] : memref<16x128xf32, #tpu.memory_space<vmem>>, vector<16x128xf32>
      %c0_12 = arith.constant 0 : index
      %c0_13 = arith.constant 0 : index
      %13 = vector.load %arg4[%c0_12, %c0_13] : memref<1x128xf32, #tpu.memory_space<vmem>>, vector<1x128xf32>
      %14 = vector.broadcast %13 : vector<1x128xf32> to vector<16x128xf32>
      %15 = arith.addf %12, %14 : vector<16x128xf32>
      %cst_14 = arith.constant 0.000000e+00 : f32
      %16 = vector.broadcast %cst_14 : f32 to vector<16x128xf32>
      %17 = arith.maximumf %15, %16 : vector<16x128xf32>
      %18 = arith.truncf %17 : vector<16x128xf32> to vector<16x128xbf16>
      %c0_15 = arith.constant 0 : index
      %c0_16 = arith.constant 0 : index
      %19 = vector.load %arg5[%c0_15, %c0_16] : memref<128x128xbf16, #tpu.memory_space<vmem>>, vector<128x128xbf16>
      %cst_17 = arith.constant dense<0.000000e+00> : vector<16x128xf32>
      %20 = tpu.matmul %18, %19, %cst_17 {dimension_numbers = #tpu.dot_dimension_numbers<[1], [0], [0], [1], [0, 0, 1, 1], [], []>} : vector<16x128xbf16>, vector<128x128xbf16>, vector<16x128xf32> -> vector<16x128xf32>
      %c0_18 = arith.constant 0 : index
      %c0_19 = arith.constant 0 : index
      %21 = vector.load %arg6[%c0_18, %c0_19] : memref<1x128xf32, #tpu.memory_space<vmem>>, vector<1x128xf32>
      %22 = vector.broadcast %21 : vector<1x128xf32> to vector<16x128xf32>
      %23 = arith.addf %20, %22 : vector<16x128xf32>
      %cst_20 = arith.constant 0.000000e+00 : f32
      %24 = vector.broadcast %cst_20 : f32 to vector<16x128xf32>
      %25 = arith.maximumf %23, %24 : vector<16x128xf32>
      %26 = arith.truncf %25 : vector<16x128xf32> to vector<16x128xbf16>
      %c0_21 = arith.constant 0 : index
      %c0_22 = arith.constant 0 : index
      %27 = vector.load %arg7[%c0_21, %c0_22] : memref<128x128xbf16, #tpu.memory_space<vmem>>, vector<128x128xbf16>
      %cst_23 = arith.constant dense<0.000000e+00> : vector<16x128xf32>
      %28 = tpu.matmul %26, %27, %cst_23 {dimension_numbers = #tpu.dot_dimension_numbers<[1], [0], [0], [1], [0, 0, 1, 1], [], []>} : vector<16x128xbf16>, vector<128x128xbf16>, vector<16x128xf32> -> vector<16x128xf32>
      %c0_24 = arith.constant 0 : index
      %c0_25 = arith.constant 0 : index
      %29 = vector.load %arg8[%c0_24, %c0_25] : memref<1x128xf32, #tpu.memory_space<vmem>>, vector<1x128xf32>
      %30 = vector.broadcast %29 : vector<1x128xf32> to vector<16x128xf32>
      %31 = arith.addf %28, %30 : vector<16x128xf32>
      %c0_26 = arith.constant 0 : index
      %c0_27 = arith.constant 0 : index
      %32 = vector.load %arg9[%c0_26, %c0_27] : memref<16x128xf32, #tpu.memory_space<vmem>>, vector<16x128xf32>
      tpu.vector_store %arg9[%c0_26, %c0_27], %31 {strides = array<i32>} : memref<16x128xf32, #tpu.memory_space<vmem>>, vector<16x128xf32>,
    } else {
    }
    return
  }
  func.func @transform_0(%arg0: i32, %arg1: i32) -> (i32, i32) {
    %c0_i32 = arith.constant 0 : i32
    return %arg0, %arg1 : i32, i32
  }
  func.func @transform_1(%arg0: i32, %arg1: i32) -> (i32, i32) {
    %c0_i32 = arith.constant 0 : i32
    %c0_i32_0 = arith.constant 0 : i32
    return %arg1, %c0_i32 : i32, i32
  }
  func.func @transform_2(%arg0: i32, %arg1: i32) -> (i32, i32) {
    %c0_i32 = arith.constant 0 : i32
    %c0_i32_0 = arith.constant 0 : i32
    %c0_i32_1 = arith.constant 0 : i32
    return %c0_i32, %c0_i32_0 : i32, i32
  }
  func.func @transform_3(%arg0: i32, %arg1: i32) -> (i32, i32) {
    %c0_i32 = arith.constant 0 : i32
    %c0_i32_0 = arith.constant 0 : i32
    %c0_i32_1 = arith.constant 0 : i32
    return %c0_i32, %c0_i32_0 : i32, i32
  }
  func.func @transform_4(%arg0: i32, %arg1: i32) -> (i32, i32) {
    %c0_i32 = arith.constant 0 : i32
    %c0_i32_0 = arith.constant 0 : i32
    %c0_i32_1 = arith.constant 0 : i32
    return %c0_i32, %c0_i32_0 : i32, i32
  }
  func.func @transform_5(%arg0: i32, %arg1: i32) -> (i32, i32) {
    %c0_i32 = arith.constant 0 : i32
    %c0_i32_0 = arith.constant 0 : i32
    %c0_i32_1 = arith.constant 0 : i32
    return %c0_i32, %c0_i32_0 : i32, i32
  }
  func.func @transform_6(%arg0: i32, %arg1: i32) -> (i32, i32) {
    %c0_i32 = arith.constant 0 : i32
    %c0_i32_0 = arith.constant 0 : i32
    %c0_i32_1 = arith.constant 0 : i32
    return %c0_i32, %c0_i32_0 : i32, i32
  }
  func.func @transform_7(%arg0: i32, %arg1: i32) -> (i32, i32) {
    %c0_i32 = arith.constant 0 : i32
    %c0_i32_0 = arith.constant 0 : i32
    return %arg0, %c0_i32 : i32, i32
  }
}

module attributes {stable_mosaic.version = 11 : i64} {
  func.func @_mlp_kernel(%arg0: i32, %arg1: i32, %arg2: memref<16x128xbf16, #tpu.memory_space<vmem>>, %arg3: memref<128x128xbf16, #tpu.memory_space<vmem>>, %arg4: memref<1x128xf32, #tpu.memory_space<vmem>>, %arg5: memref<128x128xbf16, #tpu.memory_space<vmem>>, %arg6: memref<1x128xf32, #tpu.memory_space<vmem>>, %arg7: memref<128x128xbf16, #tpu.memory_space<vmem>>, %arg8: memref<1x128xf32, #tpu.memory_space<vmem>>, %arg9: memref<16x128xf32, #tpu.memory_space<vmem>>, %arg10: memref<16x128xf32, #tpu.memory_space<vmem>>) attributes {dimension_semantics = [#tpu.dimension_semantics<parallel>, #tpu.dimension_semantics<arbitrary>], iteration_bounds = array<i64: 1, 1>, scalar_prefetch = 0 : i64, scratch_operands = 1 : i64, tpu.core_type = #tpu.core_type<tc>, window_params = [{transform_indices = @transform_0, window_bounds = array<i64: 16, 128>}, {transform_indices = @transform_1, window_bounds = array<i64: 128, 128>}, {pipeline_mode = #tpu.pipeline_mode<synchronous>, transform_indices = @transform_2, window_bounds = array<i64: 1, 128>}, {pipeline_mode = #tpu.pipeline_mode<synchronous>, transform_indices = @transform_3, window_bounds = array<i64: 128, 128>}, {pipeline_mode = #tpu.pipeline_mode<synchronous>, transform_indices = @transform_4, window_bounds = array<i64: 1, 128>}, {pipeline_mode = #tpu.pipeline_mode<synchronous>, transform_indices = @transform_5, window_bounds = array<i64: 128, 128>}, {pipeline_mode = #tpu.pipeline_mode<synchronous>, transform_indices = @transform_6, window_bounds = array<i64: 1, 128>}, {transform_indices = @transform_7, window_bounds = array<i64: 16, 128>}]} {
    %c0_i32 = arith.constant 0 : i32
    %0 = arith.cmpi eq, %arg1, %c0_i32 : i32
    %1 = arith.extui %0 : i1 to i32
    %c0_i32_0 = arith.constant 0 : i32
    %2 = arith.cmpi ne, %1, %c0_i32_0 : i32
    scf.if %2 {
      %cst_10 = arith.constant 0.000000e+00 : f32
      %12 = vector.broadcast %cst_10 : f32 to vector<16x128xf32>
      %c0_11 = arith.constant 0 : index
      %c0_12 = arith.constant 0 : index
      %13 = vector.load %arg10[%c0_11, %c0_12] : memref<16x128xf32, #tpu.memory_space<vmem>>, vector<16x128xf32>
      tpu.vector_store %arg10[%c0_11, %c0_12], %12 {strides = array<i32>} : memref<16x128xf32, #tpu.memory_space<vmem>>, vector<16x128xf32>,
    } else {
    }
    %c0 = arith.constant 0 : index
    %c0_1 = arith.constant 0 : index
    %3 = vector.load %arg10[%c0, %c0_1] : memref<16x128xf32, #tpu.memory_space<vmem>>, vector<16x128xf32>
    %c0_2 = arith.constant 0 : index
    %c0_3 = arith.constant 0 : index
    %4 = vector.load %arg2[%c0_2, %c0_3] : memref<16x128xbf16, #tpu.memory_space<vmem>>, vector<16x128xbf16>
    %c0_4 = arith.constant 0 : index
    %c0_5 = arith.constant 0 : index
    %5 = vector.load %arg3[%c0_4, %c0_5] : memref<128x128xbf16, #tpu.memory_space<vmem>>, vector<128x128xbf16>
    %cst = arith.constant dense<0.000000e+00> : vector<16x128xf32>
    %6 = tpu.matmul %4, %5, %cst {dimension_numbers = #tpu.dot_dimension_numbers<[1], [0], [0], [1], [0, 0, 1, 1], [], []>} : vector<16x128xbf16>, vector<128x128xbf16>, vector<16x128xf32> -> vector<16x128xf32>
    %7 = arith.addf %3, %6 : vector<16x128xf32>
    %c0_6 = arith.constant 0 : index
    %c0_7 = arith.constant 0 : index
    %8 = vector.load %arg10[%c0_6, %c0_7] : memref<16x128xf32, #tpu.memory_space<vmem>>, vector<16x128xf32>
    tpu.vector_store %arg10[%c0_6, %c0_7], %7 {strides = array<i32>} : memref<16x128xf32, #tpu.memory_space<vmem>>, vector<16x128xf32>,
    %c0_i32_8 = arith.constant 0 : i32
    %9 = arith.cmpi eq, %arg1, %c0_i32_8 : i32
    %10 = arith.extui %9 : i1 to i32
    %c0_i32_9 = arith.constant 0 : i32
    %11 = arith.cmpi ne, %10, %c0_i32_9 : i32
    scf.if %11 {
      %c0_10 = arith.constant 0 : index
      %c0_11 = arith.constant 0 : index
      %12 = vector.load %arg10[%c0_10, %c0_11] : memref<16x128xf32, #tpu.memory_space<vmem>>, vector<16x128xf32>
      %c0_12 = arith.constant 0 : index
      %c0_13 = arith.constant 0 : index
      %13 = vector.load %arg4[%c0_12, %c0_13] : memref<1x128xf32, #tpu.memory_space<vmem>>, vector<1x128xf32>
      %14 = vector.broadcast %13 : vector<1x128xf32> to vector<16x128xf32>
      %15 = arith.addf %12, %14 : vector<16x128xf32>
      %cst_14 = arith.constant 0.000000e+00 : f32
      %16 = vector.broadcast %cst_14 : f32 to vector<16x128xf32>
      %17 = arith.maximumf %15, %16 : vector<16x128xf32>
      %18 = arith.truncf %17 : vector<16x128xf32> to vector<16x128xbf16>
      %c0_15 = arith.constant 0 : index
      %c0_16 = arith.constant 0 : index
      %19 = vector.load %arg5[%c0_15, %c0_16] : memref<128x128xbf16, #tpu.memory_space<vmem>>, vector<128x128xbf16>
      %cst_17 = arith.constant dense<0.000000e+00> : vector<16x128xf32>
      %20 = tpu.matmul %18, %19, %cst_17 {dimension_numbers = #tpu.dot_dimension_numbers<[1], [0], [0], [1], [0, 0, 1, 1], [], []>} : vector<16x128xbf16>, vector<128x128xbf16>, vector<16x128xf32> -> vector<16x128xf32>
      %c0_18 = arith.constant 0 : index
      %c0_19 = arith.constant 0 : index
      %21 = vector.load %arg6[%c0_18, %c0_19] : memref<1x128xf32, #tpu.memory_space<vmem>>, vector<1x128xf32>
      %22 = vector.broadcast %21 : vector<1x128xf32> to vector<16x128xf32>
      %23 = arith.addf %20, %22 : vector<16x128xf32>
      %cst_20 = arith.constant 0.000000e+00 : f32
      %24 = vector.broadcast %cst_20 : f32 to vector<16x128xf32>
      %25 = arith.maximumf %23, %24 : vector<16x128xf32>
      %26 = arith.truncf %25 : vector<16x128xf32> to vector<16x128xbf16>
      %c0_21 = arith.constant 0 : index
      %c0_22 = arith.constant 0 : index
      %27 = vector.load %arg7[%c0_21, %c0_22] : memref<128x128xbf16, #tpu.memory_space<vmem>>, vector<128x128xbf16>
      %cst_23 = arith.constant dense<0.000000e+00> : vector<16x128xf32>
      %28 = tpu.matmul %26, %27, %cst_23 {dimension_numbers = #tpu.dot_dimension_numbers<[1], [0], [0], [1], [0, 0, 1, 1], [], []>} : vector<16x128xbf16>, vector<128x128xbf16>, vector<16x128xf32> -> vector<16x128xf32>
      %c0_24 = arith.constant 0 : index
      %c0_25 = arith.constant 0 : index
      %29 = vector.load %arg8[%c0_24, %c0_25] : memref<1x128xf32, #tpu.memory_space<vmem>>, vector<1x128xf32>
      %30 = vector.broadcast %29 : vector<1x128xf32> to vector<16x128xf32>
      %31 = arith.addf %28, %30 : vector<16x128xf32>
      %c0_26 = arith.constant 0 : index
      %c0_27 = arith.constant 0 : index
      %32 = vector.load %arg9[%c0_26, %c0_27] : memref<16x128xf32, #tpu.memory_space<vmem>>, vector<16x128xf32>
      tpu.vector_store %arg9[%c0_26, %c0_27], %31 {strides = array<i32>} : memref<16x128xf32, #tpu.memory_space<vmem>>, vector<16x128xf32>,
    } else {
    }
    return
  }
  func.func @transform_0(%arg0: i32, %arg1: i32) -> (i32, i32) {
    %c0_i32 = arith.constant 0 : i32
    return %arg0, %arg1 : i32, i32
  }
  func.func @transform_1(%arg0: i32, %arg1: i32) -> (i32, i32) {
    %c0_i32 = arith.constant 0 : i32
    %c0_i32_0 = arith.constant 0 : i32
    return %arg1, %c0_i32 : i32, i32
  }
  func.func @transform_2(%arg0: i32, %arg1: i32) -> (i32, i32) {
    %c0_i32 = arith.constant 0 : i32
    %c0_i32_0 = arith.constant 0 : i32
    %c0_i32_1 = arith.constant 0 : i32
    return %c0_i32, %c0_i32_0 : i32, i32
  }
  func.func @transform_3(%arg0: i32, %arg1: i32) -> (i32, i32) {
    %c0_i32 = arith.constant 0 : i32
    %c0_i32_0 = arith.constant 0 : i32
    %c0_i32_1 = arith.constant 0 : i32
    return %c0_i32, %c0_i32_0 : i32, i32
  }
  func.func @transform_4(%arg0: i32, %arg1: i32) -> (i32, i32) {
    %c0_i32 = arith.constant 0 : i32
    %c0_i32_0 = arith.constant 0 : i32
    %c0_i32_1 = arith.constant 0 : i32
    return %c0_i32, %c0_i32_0 : i32, i32
  }
  func.func @transform_5(%arg0: i32, %arg1: i32) -> (i32, i32) {
    %c0_i32 = arith.constant 0 : i32
    %c0_i32_0 = arith.constant 0 : i32
    %c0_i32_1 = arith.constant 0 : i32
    return %c0_i32, %c0_i32_0 : i32, i32
  }
  func.func @transform_6(%arg0: i32, %arg1: i32) -> (i32, i32) {
    %c0_i32 = arith.constant 0 : i32
    %c0_i32_0 = arith.constant 0 : i32
    %c0_i32_1 = arith.constant 0 : i32
    return %c0_i32, %c0_i32_0 : i32, i32
  }
  func.func @transform_7(%arg0: i32, %arg1: i32) -> (i32, i32) {
    %c0_i32 = arith.constant 0 : i32
    %c0_i32_0 = arith.constant 0 : i32
    return %arg0, %c0_i32 : i32, i32
  }
}

</mosaic_0001>

<llo_original>
// kernel: tpu_custom_call.1
$region0: #{tpu_custom_call.1}
  #allocation0 [shape = 'u32[]', space=smem, size = 0x4, offset = 0x4, fixed_abs, tag = 'smem constant byte address 0x4 - core index']
  #allocation1 [shape = 'u32[144,128]{1,0:T(1,128)}', space=vmem, size = 0x12000, scoped, tag = 'internal scratch']
  #allocation2 [shape = 'f32[16,128]{1,0:T(8,128)}', space=vmem, size = 0x2000, scoped, tag = 'scratch operand']
  %s0 = inlined_call_operand.hbm [shape: bf16[16,128], index: 0, kind: input, shape index: {}]
  %s1 = inlined_call_operand.hbm [shape: bf16[128,128], index: 1, kind: input, shape index: {}]
  %s2 = inlined_call_operand.vmem [shape: f32[1,128], index: 2, kind: input, shape index: {}]
  %s3 = inlined_call_operand.hbm [shape: bf16[128,128], index: 3, kind: input, shape index: {}]
  %s4 = inlined_call_operand.vmem [shape: f32[1,128], index: 4, kind: input, shape index: {}]
  %s5 = inlined_call_operand.hbm [shape: bf16[128,128], index: 5, kind: input, shape index: {}]
  %s6 = inlined_call_operand.vmem [shape: f32[1,128], index: 6, kind: input, shape index: {}]
  %s7 = inlined_call_operand.hbm [shape: f32[16,128], index: 7, kind: output, shape index: {}]
  %s8 = sld [smem:[#allocation0]]
  $region62: #{tpu_custom_call.1} parent=0
    _
  %s10 = ssub.s32 1, %s8
  %s11 = scalar_select 0, %s10, %s8
  $region1: #{tpu_custom_call.1} parent=0
    #allocation3 [shape = 'u8[4096]{0}', space=vmem, size = 0x1000, scoped, tag = 'input window, operand 0, single buffered']
    #allocation4 [shape = 's32[1]{0}', space=sflag, size = 0x4, scoped, tag = 'scoped memory for tpu_custom_call.1']
    #allocation5 [shape = 's32[1]{0}', space=sflag, size = 0x4, scoped, tag = 'scoped memory for tpu_custom_call.1']
    #allocation6 [shape = 'u8[32768]{0}', space=vmem, size = 0x8000, scoped, tag = 'input window, operand 1, single buffered']
    #allocation7 [shape = 's32[1]{0}', space=sflag, size = 0x4, scoped, tag = 'scoped memory for tpu_custom_call.1']
    #allocation8 [shape = 'u8[32768]{0}', space=vmem, size = 0x8000, scoped, tag = 'input window, operand 3, single buffered']
    #allocation9 [shape = 'u8[32768]{0}', space=vmem, size = 0x8000, scoped, tag = 'input window, operand 5, single buffered']
    #allocation10 [shape = 's32[1]{0}', space=sflag, size = 0x4, scoped, tag = 'scoped memory for tpu_custom_call.1']
    #allocation11 [shape = 'u8[8192]{0}', space=vmem, size = 0x2000, scoped, tag = 'output window, operand 0, single buffered']
    %12 = vsyncpa [#allocation4], 0
    %13 = vsyncpa [#allocation7], 0
    %14 = vsyncpa [#allocation10], 0
    %15 = vsyncpa [#allocation5], 0
    // Predicated region
    $region2: #{tpu_custom_call.1} parent=1 // pred_check
      _
    $region3: #{tpu_custom_call.1} parent=1 // pred_check_branch
      %17 = sbr.rel (0) target = $region5
    $region4: #{tpu_custom_call.1} parent=1 // pred_region
      %s19 = ssub.s32 128, 128
      %20 = vsyncadd [#allocation4], %s19
      %s21 = sshll.u32 [#allocation3], 4
      %s22 = int_to_ptr.vmem [resolvable:$true] %s21
      %27 = dma.hbm_to_vmem [thread:$0]  %s0, 128, %s22, [#allocation4], 64, 64, 4
    $region5: #{tpu_custom_call.1} parent=1 // pred_fallthru
      _
    // Predicated region
    $region6: #{tpu_custom_call.1} parent=1 // pred_check
      _
    $region7: #{tpu_custom_call.1} parent=1 // pred_check_branch
      %29 = sbr.rel (0) target = $region9
    $region8: #{tpu_custom_call.1} parent=1 // pred_region
      %s31 = ssub.s32 1024, 1024
      %32 = vsyncadd [#allocation7], %s31
      %s33 = sshll.u32 [#allocation6], 4
      %s34 = int_to_ptr.vmem [resolvable:$true] %s33
      %39 = dma.hbm_to_vmem [thread:$0]  %s1, 1024, %s34, [#allocation7], 64, 64, 4
    $region9: #{tpu_custom_call.1} parent=1 // pred_fallthru
      _
    // Predicated region
    $region10: #{tpu_custom_call.1} parent=1 // pred_check
      _
    $region11: #{tpu_custom_call.1} parent=1 // pred_check_branch
      %41 = sbr.rel (0) target = $region13
    $region12: #{tpu_custom_call.1} parent=1 // pred_region
      _
    $region13: #{tpu_custom_call.1} parent=1 // pred_fallthru
      _
    // Predicated region
    $region14: #{tpu_custom_call.1} parent=1 // pred_check
      _
    $region15: #{tpu_custom_call.1} parent=1 // pred_check_branch
      %43 = sbr.rel (0) target = $region17
    $region16: #{tpu_custom_call.1} parent=1 // pred_region
      %s45 = ssub.s32 1024, 1024
      %46 = vsyncadd [#allocation7], %s45
      %s47 = sshll.u32 [#allocation8], 4
      %s48 = int_to_ptr.vmem [resolvable:$true] %s47
      %53 = dma.hbm_to_vmem [thread:$0]  %s3, 1024, %s48, [#allocation7], 64, 64, 4
    $region17: #{tpu_custom_call.1} parent=1 // pred_fallthru
      _
    // Predicated region
    $region18: #{tpu_custom_call.1} parent=1 // pred_check
      _
    $region19: #{tpu_custom_call.1} parent=1 // pred_check_branch
      %55 = sbr.rel (0) target = $region21
    $region20: #{tpu_custom_call.1} parent=1 // pred_region
      _
    $region21: #{tpu_custom_call.1} parent=1 // pred_fallthru
      _
    // Predicated region
    $region22: #{tpu_custom_call.1} parent=1 // pred_check
      _
    $region23: #{tpu_custom_call.1} parent=1 // pred_check_branch
      %57 = sbr.rel (0) target = $region25
    $region24: #{tpu_custom_call.1} parent=1 // pred_region
      %s59 = ssub.s32 1024, 1024
      %60 = vsyncadd [#allocation10], %s59
      %s61 = sshll.u32 [#allocation9], 4
      %s62 = int_to_ptr.vmem [resolvable:$true] %s61
      %67 = dma.hbm_to_vmem [thread:$0]  %s5, 1024, %s62, [#allocation10], 64, 64, 4
    $region25: #{tpu_custom_call.1} parent=1 // pred_fallthru
      _
    // Predicated region
    $region26: #{tpu_custom_call.1} parent=1 // pred_check
      _
    $region27: #{tpu_custom_call.1} parent=1 // pred_check_branch
      %69 = sbr.rel (0) target = $region29
    $region28: #{tpu_custom_call.1} parent=1 // pred_region
      _
    $region29: #{tpu_custom_call.1} parent=1 // pred_fallthru
      _
    // Predicated region
    $region30: #{tpu_custom_call.1} parent=1 // pred_check
      _
    $region31: #{tpu_custom_call.1} parent=1 // pred_check_branch
      %71 = sbr.rel (0) target = $region33
    $region32: #{tpu_custom_call.1} parent=1 // pred_region
      %72 = dma.done [#allocation4], 128
    $region33: #{tpu_custom_call.1} parent=1 // pred_fallthru
      _
    // Predicated region
    $region34: #{tpu_custom_call.1} parent=1 // pred_check
      _
    $region35: #{tpu_custom_call.1} parent=1 // pred_check_branch
      %74 = sbr.rel (0) target = $region37
    $region36: #{tpu_custom_call.1} parent=1 // pred_region
      %75 = dma.done [#allocation7], 1024
    $region37: #{tpu_custom_call.1} parent=1 // pred_fallthru
      _
    // Predicated region
    $region38: #{tpu_custom_call.1} parent=1 // pred_check
      _
    $region39: #{tpu_custom_call.1} parent=1 // pred_check_branch
      %77 = sbr.rel (0) target = $region41
    $region40: #{tpu_custom_call.1} parent=1 // pred_region
      %78 = dma.done [#allocation7], 1024
    $region41: #{tpu_custom_call.1} parent=1 // pred_fallthru
      _
    // Predicated region
    $region42: #{tpu_custom_call.1} parent=1 // pred_check
      _
    $region43: #{tpu_custom_call.1} parent=1 // pred_check_branch
      %80 = sbr.rel (0) target = $region45
    $region44: #{tpu_custom_call.1} parent=1 // pred_region
      %81 = dma.done [#allocation10], 1024
    $region45: #{tpu_custom_call.1} parent=1 // pred_fallthru
      _
    %p83 = scmp.eq.s32.totalorder 0, 0
    // Predicated region
    $region46: #{tpu_custom_call.1} parent=1 // pred_check
      %p84 = pneg %p83
    $region47: #{tpu_custom_call.1} parent=1 // pred_check_branch
      %86 = sbr.rel (%p84) target = $region49
    $region48: #{tpu_custom_call.1} parent=1 // pred_region
      %87 = vst [vmem:[#allocation2] sm:$0xff] 0.0
      %88 = vst [vmem:[#allocation2 + $0x8] sm:$0xff] 0.0
    $region49: #{tpu_custom_call.1} parent=1 // pred_fallthru
      _
    %v89 = vld [vmem:[#allocation2] sm:$0xff]
    %v90 = vld [vmem:[#allocation2 + $0x8] sm:$0xff]
    %v91 = vld [vmem:[#allocation3] sm:$0xf]
    %v92 = vld [vmem:[#allocation3 + $0x4] sm:$0xf]
    %v93 = vld [vmem:[#allocation6] sm:$0xf]
    %v94 = vld [vmem:[#allocation6 + $0x4] sm:$0xf]
    %v95 = vld [vmem:[#allocation6 + $0x8] sm:$0xf]
    %v96 = vld [vmem:[#allocation6 + $0xc] sm:$0xf]
    %v97 = vld [vmem:[#allocation6 + $0x10] sm:$0xf]
    %v98 = vld [vmem:[#allocation6 + $0x14] sm:$0xf]
    %v99 = vld [vmem:[#allocation6 + $0x18] sm:$0xf]
    %v100 = vld [vmem:[#allocation6 + $0x1c] sm:$0xf]
    %v101 = vld [vmem:[#allocation6 + $0x20] sm:$0xf]
    %v102 = vld [vmem:[#allocation6 + $0x24] sm:$0xf]
    %v103 = vld [vmem:[#allocation6 + $0x28] sm:$0xf]
    %v104 = vld [vmem:[#allocation6 + $0x2c] sm:$0xf]
    %v105 = vld [vmem:[#allocation6 + $0x30] sm:$0xf]
    %v106 = vld [vmem:[#allocation6 + $0x34] sm:$0xf]
    %v107 = vld [vmem:[#allocation6 + $0x38] sm:$0xf]
    %v108 = vld [vmem:[#allocation6 + $0x3c] sm:$0xf]
    %v111 = vunpack.c.l.b16 %v91
    %v112 = vunpack.c.l.b16 %v92
    %v113 = vpack.c.b16 %v112, %v111
    %v131 = vunpack.c.l.b16 %v93
    %v132 = vunpack.c.l.b16 %v94
    %v133 = vunpack.c.l.b16 %v95
    %v134 = vunpack.c.l.b16 %v96
    %v135 = vunpack.c.l.b16 %v97
    %v136 = vunpack.c.l.b16 %v98
    %v137 = vunpack.c.l.b16 %v99
    %v138 = vunpack.c.l.b16 %v100
    %v139 = vunpack.c.l.b16 %v101
    %v140 = vunpack.c.l.b16 %v102
    %v141 = vunpack.c.l.b16 %v103
    %v142 = vunpack.c.l.b16 %v104
    %v143 = vunpack.c.l.b16 %v105
    %v144 = vunpack.c.l.b16 %v106
    %v145 = vunpack.c.l.b16 %v107
    %v146 = vunpack.c.l.b16 %v108
    %v147 = vpack.c.b16 %v132, %v131
    %v148 = vpack.c.b16 %v134, %v133
    %v149 = vpack.c.b16 %v136, %v135
    %v150 = vpack.c.b16 %v138, %v137
    %v151 = vpack.c.b16 %v140, %v139
    %v152 = vpack.c.b16 %v142, %v141
    %v153 = vpack.c.b16 %v144, %v143
    %v154 = vpack.c.b16 %v146, %v145
    %163 = vmatprep.subr.bf16.mxu0 0
    %164 = vmatpush1.bf16.msra.mxu0 %v147
    %165 = vmatprep.subr.bf16.mxu0 0
    %166 = vmatpush1.bf16.msra.mxu0 %v148
    %167 = vmatprep.subr.bf16.mxu0 0
    %168 = vmatpush1.bf16.msra.mxu0 %v149
    %169 = vmatprep.subr.bf16.mxu0 0
    %170 = vmatpush1.bf16.msra.mxu0 %v150
    %171 = vmatprep.subr.bf16.mxu0 0
    %172 = vmatpush1.bf16.msra.mxu0 %v151
    %173 = vmatprep.subr.bf16.mxu0 0
    %174 = vmatpush1.bf16.msra.mxu0 %v152
    %175 = vmatprep.subr.bf16.mxu0 0
    %176 = vmatpush1.bf16.msra.mxu0 %v153
    %177 = vmatprep.subr.bf16.mxu0 0
    %178 = vmatpush1.bf16.msra.mxu0 %v154
    %179 = vmatprep.subr.bf16.mxu0 0
    %180 = vmatpush1.bf16.msra.mxu0 0
    %181 = vmatprep.subr.bf16.mxu0 0
    %182 = vmatpush1.bf16.msra.mxu0 0
    %183 = vmatprep.subr.bf16.mxu0 0
    %184 = vmatpush1.bf16.msra.mxu0 0
    %185 = vmatprep.subr.bf16.mxu0 0
    %186 = vmatpush1.bf16.msra.mxu0 0
    %187 = vmatprep.subr.bf16.mxu0 0
    %188 = vmatpush1.bf16.msra.mxu0 0
    %189 = vmatprep.subr.bf16.mxu0 0
    %190 = vmatpush1.bf16.msra.mxu0 0
    %191 = vmatprep.subr.bf16.mxu0 0
    %192 = vmatpush1.bf16.msra.mxu0 0
    %193 = vmatprep.subr.bf16.mxu0 0
    %194 = vmatpush1.bf16.msra.mxu0 0
    %195 = vmatprep.mubr.bf16.mxu0 0
    %196 = vmatmul.mubr.bf16.gmra.mrb[0].mxu0 %v113
    %v197 = vpop.f32.mrb[0].mxu0
    %v198 = vadd.f32 0.0, %v197
    %v199 = vpop.f32.mrb[0].mxu0
    %v200 = vpop.f32.mrb[0].mxu0
    %v201 = vadd.f32 0.0, %v200
    %v202 = vpop.f32.mrb[0].mxu0
    %203 = vdwg.mxu0
    %v204 = vadd.f32 %v89, %v198
    %v205 = vadd.f32 %v90, %v201
    %206 = vst [vmem:[#allocation2] sm:$0xff] %v204
    %207 = vst [vmem:[#allocation2 + $0x8] sm:$0xff] %v205
    // Predicated region
    $region50: #{tpu_custom_call.1} parent=1 // pred_check
      %p208 = pneg %p83
    $region51: #{tpu_custom_call.1} parent=1 // pred_check_branch
      %210 = sbr.rel (%p208) target = $region53
    $region52: #{tpu_custom_call.1} parent=1 // pred_region
      %v211 = vld [vmem:[#allocation2] sm:$0xff]
      %v212 = vld [vmem:[#allocation2 + $0x8] sm:$0xff]
      %v213 = vld [vmem:[%s2] sm:$0x1]
      %v215 = vlaneseq
      %v216 = vshrl.u32 %v215, 7
      %v217 = vsub.s32 0, %v216
      %v218 = vrot.slane %v213, %v217
      %v220 = vadd.f32 %v211, %v218
      %v221 = vadd.f32 %v212, %v218
      %v222 = vmax.f32 %v220, 0.0
      %v223 = vmax.f32 %v221, 0.0
      %v224 = vpack.c.bf16 %v223, %v222
      %v225 = vld [vmem:[#allocation8] sm:$0xf]
      %v226 = vld [vmem:[#allocation8 + $0x4] sm:$0xf]
      %v227 = vld [vmem:[#allocation8 + $0x8] sm:$0xf]
      %v228 = vld [vmem:[#allocation8 + $0xc] sm:$0xf]
      %v229 = vld [vmem:[#allocation8 + $0x10] sm:$0xf]
      %v230 = vld [vmem:[#allocation8 + $0x14] sm:$0xf]
      %v231 = vld [vmem:[#allocation8 + $0x18] sm:$0xf]
      %v232 = vld [vmem:[#allocation8 + $0x1c] sm:$0xf]
      %v233 = vld [vmem:[#allocation8 + $0x20] sm:$0xf]
      %v234 = vld [vmem:[#allocation8 + $0x24] sm:$0xf]
      %v235 = vld [vmem:[#allocation8 + $0x28] sm:$0xf]
      %v236 = vld [vmem:[#allocation8 + $0x2c] sm:$0xf]
      %v237 = vld [vmem:[#allocation8 + $0x30] sm:$0xf]
      %v238 = vld [vmem:[#allocation8 + $0x34] sm:$0xf]
      %v239 = vld [vmem:[#allocation8 + $0x38] sm:$0xf]
      %v240 = vld [vmem:[#allocation8 + $0x3c] sm:$0xf]
      %v241 = vld [vmem:[%s4] sm:$0x1]
      %v243 = vlaneseq
      %v244 = vshrl.u32 %v243, 7
      %v245 = vsub.s32 0, %v244
      %v246 = vrot.slane %v241, %v245
      %v264 = vunpack.c.l.b16 %v225
      %v265 = vunpack.c.l.b16 %v226
      %v266 = vunpack.c.l.b16 %v227
      %v267 = vunpack.c.l.b16 %v228
      %v268 = vunpack.c.l.b16 %v229
      %v269 = vunpack.c.l.b16 %v230
      %v270 = vunpack.c.l.b16 %v231
      %v271 = vunpack.c.l.b16 %v232
      %v272 = vunpack.c.l.b16 %v233
      %v273 = vunpack.c.l.b16 %v234
      %v274 = vunpack.c.l.b16 %v235
      %v275 = vunpack.c.l.b16 %v236
      %v276 = vunpack.c.l.b16 %v237
      %v277 = vunpack.c.l.b16 %v238
      %v278 = vunpack.c.l.b16 %v239
      %v279 = vunpack.c.l.b16 %v240
      %v280 = vpack.c.b16 %v265, %v264
      %v281 = vpack.c.b16 %v267, %v266
      %v282 = vpack.c.b16 %v269, %v268
      %v283 = vpack.c.b16 %v271, %v270
      %v284 = vpack.c.b16 %v273, %v272
      %v285 = vpack.c.b16 %v275, %v274
      %v286 = vpack.c.b16 %v277, %v276
      %v287 = vpack.c.b16 %v279, %v278
      %296 = vmatprep.subr.bf16.mxu0 0
      %297 = vmatpush1.bf16.msra.mxu0 %v280
      %298 = vmatprep.subr.bf16.mxu0 0
      %299 = vmatpush1.bf16.msra.mxu0 %v281
      %300 = vmatprep.subr.bf16.mxu0 0
      %301 = vmatpush1.bf16.msra.mxu0 %v282
      %302 = vmatprep.subr.bf16.mxu0 0
      %303 = vmatpush1.bf16.msra.mxu0 %v283
      %304 = vmatprep.subr.bf16.mxu0 0
      %305 = vmatpush1.bf16.msra.mxu0 %v284
      %306 = vmatprep.subr.bf16.mxu0 0
      %307 = vmatpush1.bf16.msra.mxu0 %v285
      %308 = vmatprep.subr.bf16.mxu0 0
      %309 = vmatpush1.bf16.msra.mxu0 %v286
      %310 = vmatprep.subr.bf16.mxu0 0
      %311 = vmatpush1.bf16.msra.mxu0 %v287
      %312 = vmatprep.subr.bf16.mxu0 0
      %313 = vmatpush1.bf16.msra.mxu0 0
      %314 = vmatprep.subr.bf16.mxu0 0
      %315 = vmatpush1.bf16.msra.mxu0 0
      %316 = vmatprep.subr.bf16.mxu0 0
      %317 = vmatpush1.bf16.msra.mxu0 0
      %318 = vmatprep.subr.bf16.mxu0 0
      %319 = vmatpush1.bf16.msra.mxu0 0
      %320 = vmatprep.subr.bf16.mxu0 0
      %321 = vmatpush1.bf16.msra.mxu0 0
      %322 = vmatprep.subr.bf16.mxu0 0
      %323 = vmatpush1.bf16.msra.mxu0 0
      %324 = vmatprep.subr.bf16.mxu0 0
      %325 = vmatpush1.bf16.msra.mxu0 0
      %326 = vmatprep.subr.bf16.mxu0 0
      %327 = vmatpush1.bf16.msra.mxu0 0
      %328 = vmatprep.mubr.bf16.mxu0 0
      %329 = vmatmul.mubr.bf16.gmra.mrb[0].mxu0 %v224
      %v330 = vpop.f32.mrb[0].mxu0
      %v331 = vadd.f32 %v246, %v330
      %v332 = vpop.f32.mrb[0].mxu0
      %v333 = vpop.f32.mrb[0].mxu0
      %v334 = vadd.f32 %v246, %v333
      %v335 = vpop.f32.mrb[0].mxu0
      %336 = vdwg.mxu0
      %v337 = vmax.f32 %v331, 0.0
      %v338 = vmax.f32 %v334, 0.0
      %v339 = vpack.c.bf16 %v338, %v337
      %v340 = vld [vmem:[#allocation9] sm:$0xf]
      %v341 = vld [vmem:[#allocation9 + $0x4] sm:$0xf]
      %v342 = vld [vmem:[#allocation9 + $0x8] sm:$0xf]
      %v343 = vld [vmem:[#allocation9 + $0xc] sm:$0xf]
      %v344 = vld [vmem:[#allocation9 + $0x10] sm:$0xf]
      %v345 = vld [vmem:[#allocation9 + $0x14] sm:$0xf]
      %v346 = vld [vmem:[#allocation9 + $0x18] sm:$0xf]
      %v347 = vld [vmem:[#allocation9 + $0x1c] sm:$0xf]
      %v348 = vld [vmem:[#allocation9 + $0x20] sm:$0xf]
      %v349 = vld [vmem:[#allocation9 + $0x24] sm:$0xf]
      %v350 = vld [vmem:[#allocation9 + $0x28] sm:$0xf]
      %v351 = vld [vmem:[#allocation9 + $0x2c] sm:$0xf]
      %v352 = vld [vmem:[#allocation9 + $0x30] sm:$0xf]
      %v353 = vld [vmem:[#allocation9 + $0x34] sm:$0xf]
      %v354 = vld [vmem:[#allocation9 + $0x38] sm:$0xf]
      %v355 = vld [vmem:[#allocation9 + $0x3c] sm:$0xf]
      %v356 = vld [vmem:[%s6] sm:$0x1]
      %v358 = vlaneseq
      %v359 = vshrl.u32 %v358, 7
      %v360 = vsub.s32 0, %v359
      %v361 = vrot.slane %v356, %v360
      %v379 = vunpack.c.l.b16 %v340
      %v380 = vunpack.c.l.b16 %v341
      %v381 = vunpack.c.l.b16 %v342
      %v382 = vunpack.c.l.b16 %v343
      %v383 = vunpack.c.l.b16 %v344
      %v384 = vunpack.c.l.b16 %v345
      %v385 = vunpack.c.l.b16 %v346
      %v386 = vunpack.c.l.b16 %v347
      %v387 = vunpack.c.l.b16 %v348
      %v388 = vunpack.c.l.b16 %v349
      %v389 = vunpack.c.l.b16 %v350
      %v390 = vunpack.c.l.b16 %v351
      %v391 = vunpack.c.l.b16 %v352
      %v392 = vunpack.c.l.b16 %v353
      %v393 = vunpack.c.l.b16 %v354
      %v394 = vunpack.c.l.b16 %v355
      %v395 = vpack.c.b16 %v380, %v379
      %v396 = vpack.c.b16 %v382, %v381
      %v397 = vpack.c.b16 %v384, %v383
      %v398 = vpack.c.b16 %v386, %v385
      %v399 = vpack.c.b16 %v388, %v387
      %v400 = vpack.c.b16 %v390, %v389
      %v401 = vpack.c.b16 %v392, %v391
      %v402 = vpack.c.b16 %v394, %v393
      %411 = vmatprep.subr.bf16.mxu0 0
      %412 = vmatpush1.bf16.msra.mxu0 %v395
      %413 = vmatprep.subr.bf16.mxu0 0
      %414 = vmatpush1.bf16.msra.mxu0 %v396
      %415 = vmatprep.subr.bf16.mxu0 0
      %416 = vmatpush1.bf16.msra.mxu0 %v397
      %417 = vmatprep.subr.bf16.mxu0 0
      %418 = vmatpush1.bf16.msra.mxu0 %v398
      %419 = vmatprep.subr.bf16.mxu0 0
      %420 = vmatpush1.bf16.msra.mxu0 %v399
      %421 = vmatprep.subr.bf16.mxu0 0
      %422 = vmatpush1.bf16.msra.mxu0 %v400
      %423 = vmatprep.subr.bf16.mxu0 0
      %424 = vmatpush1.bf16.msra.mxu0 %v401
      %425 = vmatprep.subr.bf16.mxu0 0
      %426 = vmatpush1.bf16.msra.mxu0 %v402
      %427 = vmatprep.subr.bf16.mxu0 0
      %428 = vmatpush1.bf16.msra.mxu0 0
      %429 = vmatprep.subr.bf16.mxu0 0
      %430 = vmatpush1.bf16.msra.mxu0 0
      %431 = vmatprep.subr.bf16.mxu0 0
      %432 = vmatpush1.bf16.msra.mxu0 0
      %433 = vmatprep.subr.bf16.mxu0 0
      %434 = vmatpush1.bf16.msra.mxu0 0
      %435 = vmatprep.subr.bf16.mxu0 0
      %436 = vmatpush1.bf16.msra.mxu0 0
      %437 = vmatprep.subr.bf16.mxu0 0
      %438 = vmatpush1.bf16.msra.mxu0 0
      %439 = vmatprep.subr.bf16.mxu0 0
      %440 = vmatpush1.bf16.msra.mxu0 0
      %441 = vmatprep.subr.bf16.mxu0 0
      %442 = vmatpush1.bf16.msra.mxu0 0
      %443 = vmatprep.mubr.bf16.mxu0 0
      %444 = vmatmul.mubr.bf16.gmra.mrb[0].mxu0 %v339
      %v445 = vpop.f32.mrb[0].mxu0
      %v446 = vadd.f32 %v361, %v445
      %v447 = vpop.f32.mrb[0].mxu0
      %v448 = vpop.f32.mrb[0].mxu0
      %v449 = vadd.f32 %v361, %v448
      %v450 = vpop.f32.mrb[0].mxu0
      %451 = vdwg.mxu0
      %452 = vst [vmem:[#allocation11] sm:$0xff] %v446
      %453 = vst [vmem:[#allocation11 + $0x8] sm:$0xff] %v449
    $region53: #{tpu_custom_call.1} parent=1 // pred_fallthru
      _
    // Predicated region
    $region54: #{tpu_custom_call.1} parent=1 // pred_check
      _
    $region55: #{tpu_custom_call.1} parent=1 // pred_check_branch
      %455 = sbr.rel (0) target = $region57
    $region56: #{tpu_custom_call.1} parent=1 // pred_region
      %s457 = ssub.s32 256, 256
      %458 = vsyncadd [#allocation5], %s457
      %s459 = sshll.u32 [#allocation11], 4
      %s460 = int_to_ptr.vmem [resolvable:$true] %s459
      %465 = dma.vmem_to_hbm [thread:$0]  %s460, 256, %s7, [#allocation5], 128, 128, 8
    $region57: #{tpu_custom_call.1} parent=1 // pred_fallthru
      _
    // Predicated region
    $region58: #{tpu_custom_call.1} parent=1 // pred_check
      _
    $region59: #{tpu_custom_call.1} parent=1 // pred_check_branch
      %467 = sbr.rel (0) target = $region61
    $region60: #{tpu_custom_call.1} parent=1 // pred_region
      %468 = dma.done [#allocation5], 256
    $region61: #{tpu_custom_call.1} parent=1 // pred_fallthru
      _
    %469 = vsyncpa [#allocation4], 1
    %470 = vsyncpa [#allocation7], 1
    %471 = vsyncpa [#allocation10], 1
    %472 = vsyncpa [#allocation5], 1

// kernel: tpu_custom_call.1
$region0: #{tpu_custom_call.1}
  #allocation0 [shape = 'u32[]', space=smem, size = 0x4, offset = 0x4, fixed_abs, tag = 'smem constant byte address 0x4 - core index']
  #allocation1 [shape = 'u32[144,128]{1,0:T(1,128)}', space=vmem, size = 0x12000, scoped, tag = 'internal scratch']
  #allocation2 [shape = 'f32[16,128]{1,0:T(8,128)}', space=vmem, size = 0x2000, scoped, tag = 'scratch operand']
  %s0 = inlined_call_operand.hbm [shape: bf16[16,128], index: 0, kind: input, shape index: {}]
  %s1 = inlined_call_operand.hbm [shape: bf16[128,128], index: 1, kind: input, shape index: {}]
  %s2 = inlined_call_operand.vmem [shape: f32[1,128], index: 2, kind: input, shape index: {}]
  %s3 = inlined_call_operand.hbm [shape: bf16[128,128], index: 3, kind: input, shape index: {}]
  %s4 = inlined_call_operand.vmem [shape: f32[1,128], index: 4, kind: input, shape index: {}]
  %s5 = inlined_call_operand.hbm [shape: bf16[128,128], index: 5, kind: input, shape index: {}]
  %s6 = inlined_call_operand.vmem [shape: f32[1,128], index: 6, kind: input, shape index: {}]
  %s7 = inlined_call_operand.hbm [shape: f32[16,128], index: 7, kind: output, shape index: {}]
  %s8 = sld [smem:[#allocation0]]
  $region62: #{tpu_custom_call.1} parent=0
    _
  %s10 = ssub.s32 1, %s8
  %s11 = scalar_select 0, %s10, %s8
  $region1: #{tpu_custom_call.1} parent=0
    #allocation3 [shape = 'u8[4096]{0}', space=vmem, size = 0x1000, scoped, tag = 'input window, operand 0, single buffered']
    #allocation4 [shape = 's32[1]{0}', space=sflag, size = 0x4, scoped, tag = 'scoped memory for tpu_custom_call.1']
    #allocation5 [shape = 's32[1]{0}', space=sflag, size = 0x4, scoped, tag = 'scoped memory for tpu_custom_call.1']
    #allocation6 [shape = 'u8[32768]{0}', space=vmem, size = 0x8000, scoped, tag = 'input window, operand 1, single buffered']
    #allocation7 [shape = 's32[1]{0}', space=sflag, size = 0x4, scoped, tag = 'scoped memory for tpu_custom_call.1']
    #allocation8 [shape = 'u8[32768]{0}', space=vmem, size = 0x8000, scoped, tag = 'input window, operand 3, single buffered']
    #allocation9 [shape = 'u8[32768]{0}', space=vmem, size = 0x8000, scoped, tag = 'input window, operand 5, single buffered']
    #allocation10 [shape = 's32[1]{0}', space=sflag, size = 0x4, scoped, tag = 'scoped memory for tpu_custom_call.1']
    #allocation11 [shape = 'u8[8192]{0}', space=vmem, size = 0x2000, scoped, tag = 'output window, operand 0, single buffered']
    %12 = vsyncpa [#allocation4], 0
    %13 = vsyncpa [#allocation7], 0
    %14 = vsyncpa [#allocation10], 0
    %15 = vsyncpa [#allocation5], 0
    // Predicated region
    $region2: #{tpu_custom_call.1} parent=1 // pred_check
      _
    $region3: #{tpu_custom_call.1} parent=1 // pred_check_branch
      %17 = sbr.rel (0) target = $region5
    $region4: #{tpu_custom_call.1} parent=1 // pred_region
      %s19 = ssub.s32 128, 128
      %20 = vsyncadd [#allocation4], %s19
      %s21 = sshll.u32 [#allocation3], 4
      %s22 = int_to_ptr.vmem [resolvable:$true] %s21
      %27 = dma.hbm_to_vmem [thread:$0]  %s0, 128, %s22, [#allocation4], 64, 64, 4
    $region5: #{tpu_custom_call.1} parent=1 // pred_fallthru
      _
    // Predicated region
    $region6: #{tpu_custom_call.1} parent=1 // pred_check
      _
    $region7: #{tpu_custom_call.1} parent=1 // pred_check_branch
      %29 = sbr.rel (0) target = $region9
    $region8: #{tpu_custom_call.1} parent=1 // pred_region
      %s31 = ssub.s32 1024, 1024
      %32 = vsyncadd [#allocation7], %s31
      %s33 = sshll.u32 [#allocation6], 4
      %s34 = int_to_ptr.vmem [resolvable:$true] %s33
      %39 = dma.hbm_to_vmem [thread:$0]  %s1, 1024, %s34, [#allocation7], 64, 64, 4
    $region9: #{tpu_custom_call.1} parent=1 // pred_fallthru
      _
    // Predicated region
    $region10: #{tpu_custom_call.1} parent=1 // pred_check
      _
    $region11: #{tpu_custom_call.1} parent=1 // pred_check_branch
      %41 = sbr.rel (0) target = $region13
    $region12: #{tpu_custom_call.1} parent=1 // pred_region
      _
    $region13: #{tpu_custom_call.1} parent=1 // pred_fallthru
      _
    // Predicated region
    $region14: #{tpu_custom_call.1} parent=1 // pred_check
      _
    $region15: #{tpu_custom_call.1} parent=1 // pred_check_branch
      %43 = sbr.rel (0) target = $region17
    $region16: #{tpu_custom_call.1} parent=1 // pred_region
      %s45 = ssub.s32 1024, 1024
      %46 = vsyncadd [#allocation7], %s45
      %s47 = sshll.u32 [#allocation8], 4
      %s48 = int_to_ptr.vmem [resolvable:$true] %s47
      %53 = dma.hbm_to_vmem [thread:$0]  %s3, 1024, %s48, [#allocation7], 64, 64, 4
    $region17: #{tpu_custom_call.1} parent=1 // pred_fallthru
      _
    // Predicated region
    $region18: #{tpu_custom_call.1} parent=1 // pred_check
      _
    $region19: #{tpu_custom_call.1} parent=1 // pred_check_branch
      %55 = sbr.rel (0) target = $region21
    $region20: #{tpu_custom_call.1} parent=1 // pred_region
      _
    $region21: #{tpu_custom_call.1} parent=1 // pred_fallthru
      _
    // Predicated region
    $region22: #{tpu_custom_call.1} parent=1 // pred_check
      _
    $region23: #{tpu_custom_call.1} parent=1 // pred_check_branch
      %57 = sbr.rel (0) target = $region25
    $region24: #{tpu_custom_call.1} parent=1 // pred_region
      %s59 = ssub.s32 1024, 1024
      %60 = vsyncadd [#allocation10], %s59
      %s61 = sshll.u32 [#allocation9], 4
      %s62 = int_to_ptr.vmem [resolvable:$true] %s61
      %67 = dma.hbm_to_vmem [thread:$0]  %s5, 1024, %s62, [#allocation10], 64, 64, 4
    $region25: #{tpu_custom_call.1} parent=1 // pred_fallthru
      _
    // Predicated region
    $region26: #{tpu_custom_call.1} parent=1 // pred_check
      _
    $region27: #{tpu_custom_call.1} parent=1 // pred_check_branch
      %69 = sbr.rel (0) target = $region29
    $region28: #{tpu_custom_call.1} parent=1 // pred_region
      _
    $region29: #{tpu_custom_call.1} parent=1 // pred_fallthru
      _
    // Predicated region
    $region30: #{tpu_custom_call.1} parent=1 // pred_check
      _
    $region31: #{tpu_custom_call.1} parent=1 // pred_check_branch
      %71 = sbr.rel (0) target = $region33
    $region32: #{tpu_custom_call.1} parent=1 // pred_region
      %72 = dma.done [#allocation4], 128
    $region33: #{tpu_custom_call.1} parent=1 // pred_fallthru
      _
    // Predicated region
    $region34: #{tpu_custom_call.1} parent=1 // pred_check
      _
    $region35: #{tpu_custom_call.1} parent=1 // pred_check_branch
      %74 = sbr.rel (0) target = $region37
    $region36: #{tpu_custom_call.1} parent=1 // pred_region
      %75 = dma.done [#allocation7], 1024
    $region37: #{tpu_custom_call.1} parent=1 // pred_fallthru
      _
    // Predicated region
    $region38: #{tpu_custom_call.1} parent=1 // pred_check
      _
    $region39: #{tpu_custom_call.1} parent=1 // pred_check_branch
      %77 = sbr.rel (0) target = $region41
    $region40: #{tpu_custom_call.1} parent=1 // pred_region
      %78 = dma.done [#allocation7], 1024
    $region41: #{tpu_custom_call.1} parent=1 // pred_fallthru
      _
    // Predicated region
    $region42: #{tpu_custom_call.1} parent=1 // pred_check
      _
    $region43: #{tpu_custom_call.1} parent=1 // pred_check_branch
      %80 = sbr.rel (0) target = $region45
    $region44: #{tpu_custom_call.1} parent=1 // pred_region
      %81 = dma.done [#allocation10], 1024
    $region45: #{tpu_custom_call.1} parent=1 // pred_fallthru
      _
    %p83 = scmp.eq.s32.totalorder 0, 0
    // Predicated region
    $region46: #{tpu_custom_call.1} parent=1 // pred_check
      %p84 = pneg %p83
    $region47: #{tpu_custom_call.1} parent=1 // pred_check_branch
      %86 = sbr.rel (%p84) target = $region49
    $region48: #{tpu_custom_call.1} parent=1 // pred_region
      %87 = vst [vmem:[#allocation2] sm:$0xff] 0.0
      %88 = vst [vmem:[#allocation2 + $0x8] sm:$0xff] 0.0
    $region49: #{tpu_custom_call.1} parent=1 // pred_fallthru
      _
    %v89 = vld [vmem:[#allocation2] sm:$0xff]
    %v90 = vld [vmem:[#allocation2 + $0x8] sm:$0xff]
    %v91 = vld [vmem:[#allocation3] sm:$0xf]
    %v92 = vld [vmem:[#allocation3 + $0x4] sm:$0xf]
    %v93 = vld [vmem:[#allocation6] sm:$0xf]
    %v94 = vld [vmem:[#allocation6 + $0x4] sm:$0xf]
    %v95 = vld [vmem:[#allocation6 + $0x8] sm:$0xf]
    %v96 = vld [vmem:[#allocation6 + $0xc] sm:$0xf]
    %v97 = vld [vmem:[#allocation6 + $0x10] sm:$0xf]
    %v98 = vld [vmem:[#allocation6 + $0x14] sm:$0xf]
    %v99 = vld [vmem:[#allocation6 + $0x18] sm:$0xf]
    %v100 = vld [vmem:[#allocation6 + $0x1c] sm:$0xf]
    %v101 = vld [vmem:[#allocation6 + $0x20] sm:$0xf]
    %v102 = vld [vmem:[#allocation6 + $0x24] sm:$0xf]
    %v103 = vld [vmem:[#allocation6 + $0x28] sm:$0xf]
    %v104 = vld [vmem:[#allocation6 + $0x2c] sm:$0xf]
    %v105 = vld [vmem:[#allocation6 + $0x30] sm:$0xf]
    %v106 = vld [vmem:[#allocation6 + $0x34] sm:$0xf]
    %v107 = vld [vmem:[#allocation6 + $0x38] sm:$0xf]
    %v108 = vld [vmem:[#allocation6 + $0x3c] sm:$0xf]
    %v111 = vunpack.c.l.b16 %v91
    %v112 = vunpack.c.l.b16 %v92
    %v113 = vpack.c.b16 %v112, %v111
    %v131 = vunpack.c.l.b16 %v93
    %v132 = vunpack.c.l.b16 %v94
    %v133 = vunpack.c.l.b16 %v95
    %v134 = vunpack.c.l.b16 %v96
    %v135 = vunpack.c.l.b16 %v97
    %v136 = vunpack.c.l.b16 %v98
    %v137 = vunpack.c.l.b16 %v99
    %v138 = vunpack.c.l.b16 %v100
    %v139 = vunpack.c.l.b16 %v101
    %v140 = vunpack.c.l.b16 %v102
    %v141 = vunpack.c.l.b16 %v103
    %v142 = vunpack.c.l.b16 %v104
    %v143 = vunpack.c.l.b16 %v105
    %v144 = vunpack.c.l.b16 %v106
    %v145 = vunpack.c.l.b16 %v107
    %v146 = vunpack.c.l.b16 %v108
    %v147 = vpack.c.b16 %v132, %v131
    %v148 = vpack.c.b16 %v134, %v133
    %v149 = vpack.c.b16 %v136, %v135
    %v150 = vpack.c.b16 %v138, %v137
    %v151 = vpack.c.b16 %v140, %v139
    %v152 = vpack.c.b16 %v142, %v141
    %v153 = vpack.c.b16 %v144, %v143
    %v154 = vpack.c.b16 %v146, %v145
    %163 = vmatprep.subr.bf16.mxu0 0
    %164 = vmatpush1.bf16.msra.mxu0 %v147
    %165 = vmatprep.subr.bf16.mxu0 0
    %166 = vmatpush1.bf16.msra.mxu0 %v148
    %167 = vmatprep.subr.bf16.mxu0 0
    %168 = vmatpush1.bf16.msra.mxu0 %v149
    %169 = vmatprep.subr.bf16.mxu0 0
    %170 = vmatpush1.bf16.msra.mxu0 %v150
    %171 = vmatprep.subr.bf16.mxu0 0
    %172 = vmatpush1.bf16.msra.mxu0 %v151
    %173 = vmatprep.subr.bf16.mxu0 0
    %174 = vmatpush1.bf16.msra.mxu0 %v152
    %175 = vmatprep.subr.bf16.mxu0 0
    %176 = vmatpush1.bf16.msra.mxu0 %v153
    %177 = vmatprep.subr.bf16.mxu0 0
    %178 = vmatpush1.bf16.msra.mxu0 %v154
    %179 = vmatprep.subr.bf16.mxu0 0
    %180 = vmatpush1.bf16.msra.mxu0 0
    %181 = vmatprep.subr.bf16.mxu0 0
    %182 = vmatpush1.bf16.msra.mxu0 0
    %183 = vmatprep.subr.bf16.mxu0 0
    %184 = vmatpush1.bf16.msra.mxu0 0
    %185 = vmatprep.subr.bf16.mxu0 0
    %186 = vmatpush1.bf16.msra.mxu0 0
    %187 = vmatprep.subr.bf16.mxu0 0
    %188 = vmatpush1.bf16.msra.mxu0 0
    %189 = vmatprep.subr.bf16.mxu0 0
    %190 = vmatpush1.bf16.msra.mxu0 0
    %191 = vmatprep.subr.bf16.mxu0 0
    %192 = vmatpush1.bf16.msra.mxu0 0
    %193 = vmatprep.subr.bf16.mxu0 0
    %194 = vmatpush1.bf16.msra.mxu0 0
    %195 = vmatprep.mubr.bf16.mxu0 0
    %196 = vmatmul.mubr.bf16.gmra.mrb[0].mxu0 %v113
    %v197 = vpop.f32.mrb[0].mxu0
    %v198 = vadd.f32 0.0, %v197
    %v199 = vpop.f32.mrb[0].mxu0
    %v200 = vpop.f32.mrb[0].mxu0
    %v201 = vadd.f32 0.0, %v200
    %v202 = vpop.f32.mrb[0].mxu0
    %203 = vdwg.mxu0
    %v204 = vadd.f32 %v89, %v198
    %v205 = vadd.f32 %v90, %v201
    %206 = vst [vmem:[#allocation2] sm:$0xff] %v204
    %207 = vst [vmem:[#allocation2 + $0x8] sm:$0xff] %v205
    // Predicated region
    $region50: #{tpu_custom_call.1} parent=1 // pred_check
      %p208 = pneg %p83
    $region51: #{tpu_custom_call.1} parent=1 // pred_check_branch
      %210 = sbr.rel (%p208) target = $region53
    $region52: #{tpu_custom_call.1} parent=1 // pred_region
      %v211 = vld [vmem:[#allocation2] sm:$0xff]
      %v212 = vld [vmem:[#allocation2 + $0x8] sm:$0xff]
      %v213 = vld [vmem:[%s2] sm:$0x1]
      %v215 = vlaneseq
      %v216 = vshrl.u32 %v215, 7
      %v217 = vsub.s32 0, %v216
      %v218 = vrot.slane %v213, %v217
      %v220 = vadd.f32 %v211, %v218
      %v221 = vadd.f32 %v212, %v218
      %v222 = vmax.f32 %v220, 0.0
      %v223 = vmax.f32 %v221, 0.0
      %v224 = vpack.c.bf16 %v223, %v222
      %v225 = vld [vmem:[#allocation8] sm:$0xf]
      %v226 = vld [vmem:[#allocation8 + $0x4] sm:$0xf]
      %v227 = vld [vmem:[#allocation8 + $0x8] sm:$0xf]
      %v228 = vld [vmem:[#allocation8 + $0xc] sm:$0xf]
      %v229 = vld [vmem:[#allocation8 + $0x10] sm:$0xf]
      %v230 = vld [vmem:[#allocation8 + $0x14] sm:$0xf]
      %v231 = vld [vmem:[#allocation8 + $0x18] sm:$0xf]
      %v232 = vld [vmem:[#allocation8 + $0x1c] sm:$0xf]
      %v233 = vld [vmem:[#allocation8 + $0x20] sm:$0xf]
      %v234 = vld [vmem:[#allocation8 + $0x24] sm:$0xf]
      %v235 = vld [vmem:[#allocation8 + $0x28] sm:$0xf]
      %v236 = vld [vmem:[#allocation8 + $0x2c] sm:$0xf]
      %v237 = vld [vmem:[#allocation8 + $0x30] sm:$0xf]
      %v238 = vld [vmem:[#allocation8 + $0x34] sm:$0xf]
      %v239 = vld [vmem:[#allocation8 + $0x38] sm:$0xf]
      %v240 = vld [vmem:[#allocation8 + $0x3c] sm:$0xf]
      %v241 = vld [vmem:[%s4] sm:$0x1]
      %v243 = vlaneseq
      %v244 = vshrl.u32 %v243, 7
      %v245 = vsub.s32 0, %v244
      %v246 = vrot.slane %v241, %v245
      %v264 = vunpack.c.l.b16 %v225
      %v265 = vunpack.c.l.b16 %v226
      %v266 = vunpack.c.l.b16 %v227
      %v267 = vunpack.c.l.b16 %v228
      %v268 = vunpack.c.l.b16 %v229
      %v269 = vunpack.c.l.b16 %v230
      %v270 = vunpack.c.l.b16 %v231
      %v271 = vunpack.c.l.b16 %v232
      %v272 = vunpack.c.l.b16 %v233
      %v273 = vunpack.c.l.b16 %v234
      %v274 = vunpack.c.l.b16 %v235
      %v275 = vunpack.c.l.b16 %v236
      %v276 = vunpack.c.l.b16 %v237
      %v277 = vunpack.c.l.b16 %v238
      %v278 = vunpack.c.l.b16 %v239
      %v279 = vunpack.c.l.b16 %v240
      %v280 = vpack.c.b16 %v265, %v264
      %v281 = vpack.c.b16 %v267, %v266
      %v282 = vpack.c.b16 %v269, %v268
      %v283 = vpack.c.b16 %v271, %v270
      %v284 = vpack.c.b16 %v273, %v272
      %v285 = vpack.c.b16 %v275, %v274
      %v286 = vpack.c.b16 %v277, %v276
      %v287 = vpack.c.b16 %v279, %v278
      %296 = vmatprep.subr.bf16.mxu0 0
      %297 = vmatpush1.bf16.msra.mxu0 %v280
      %298 = vmatprep.subr.bf16.mxu0 0
      %299 = vmatpush1.bf16.msra.mxu0 %v281
      %300 = vmatprep.subr.bf16.mxu0 0
      %301 = vmatpush1.bf16.msra.mxu0 %v282
      %302 = vmatprep.subr.bf16.mxu0 0
      %303 = vmatpush1.bf16.msra.mxu0 %v283
      %304 = vmatprep.subr.bf16.mxu0 0
      %305 = vmatpush1.bf16.msra.mxu0 %v284
      %306 = vmatprep.subr.bf16.mxu0 0
      %307 = vmatpush1.bf16.msra.mxu0 %v285
      %308 = vmatprep.subr.bf16.mxu0 0
      %309 = vmatpush1.bf16.msra.mxu0 %v286
      %310 = vmatprep.subr.bf16.mxu0 0
      %311 = vmatpush1.bf16.msra.mxu0 %v287
      %312 = vmatprep.subr.bf16.mxu0 0
      %313 = vmatpush1.bf16.msra.mxu0 0
      %314 = vmatprep.subr.bf16.mxu0 0
      %315 = vmatpush1.bf16.msra.mxu0 0
      %316 = vmatprep.subr.bf16.mxu0 0
      %317 = vmatpush1.bf16.msra.mxu0 0
      %318 = vmatprep.subr.bf16.mxu0 0
      %319 = vmatpush1.bf16.msra.mxu0 0
      %320 = vmatprep.subr.bf16.mxu0 0
      %321 = vmatpush1.bf16.msra.mxu0 0
      %322 = vmatprep.subr.bf16.mxu0 0
      %323 = vmatpush1.bf16.msra.mxu0 0
      %324 = vmatprep.subr.bf16.mxu0 0
      %325 = vmatpush1.bf16.msra.mxu0 0
      %326 = vmatprep.subr.bf16.mxu0 0
      %327 = vmatpush1.bf16.msra.mxu0 0
      %328 = vmatprep.mubr.bf16.mxu0 0
      %329 = vmatmul.mubr.bf16.gmra.mrb[0].mxu0 %v224
      %v330 = vpop.f32.mrb[0].mxu0
      %v331 = vadd.f32 %v246, %v330
      %v332 = vpop.f32.mrb[0].mxu0
      %v333 = vpop.f32.mrb[0].mxu0
      %v334 = vadd.f32 %v246, %v333
      %v335 = vpop.f32.mrb[0].mxu0
      %336 = vdwg.mxu0
      %v337 = vmax.f32 %v331, 0.0
      %v338 = vmax.f32 %v334, 0.0
      %v339 = vpack.c.bf16 %v338, %v337
      %v340 = vld [vmem:[#allocation9] sm:$0xf]
      %v341 = vld [vmem:[#allocation9 + $0x4] sm:$0xf]
      %v342 = vld [vmem:[#allocation9 + $0x8] sm:$0xf]
      %v343 = vld [vmem:[#allocation9 + $0xc] sm:$0xf]
      %v344 = vld [vmem:[#allocation9 + $0x10] sm:$0xf]
      %v345 = vld [vmem:[#allocation9 + $0x14] sm:$0xf]
      %v346 = vld [vmem:[#allocation9 + $0x18] sm:$0xf]
      %v347 = vld [vmem:[#allocation9 + $0x1c] sm:$0xf]
      %v348 = vld [vmem:[#allocation9 + $0x20] sm:$0xf]
      %v349 = vld [vmem:[#allocation9 + $0x24] sm:$0xf]
      %v350 = vld [vmem:[#allocation9 + $0x28] sm:$0xf]
      %v351 = vld [vmem:[#allocation9 + $0x2c] sm:$0xf]
      %v352 = vld [vmem:[#allocation9 + $0x30] sm:$0xf]
      %v353 = vld [vmem:[#allocation9 + $0x34] sm:$0xf]
      %v354 = vld [vmem:[#allocation9 + $0x38] sm:$0xf]
      %v355 = vld [vmem:[#allocation9 + $0x3c] sm:$0xf]
      %v356 = vld [vmem:[%s6] sm:$0x1]
      %v358 = vlaneseq
      %v359 = vshrl.u32 %v358, 7
      %v360 = vsub.s32 0, %v359
      %v361 = vrot.slane %v356, %v360
      %v379 = vunpack.c.l.b16 %v340
      %v380 = vunpack.c.l.b16 %v341
      %v381 = vunpack.c.l.b16 %v342
      %v382 = vunpack.c.l.b16 %v343
      %v383 = vunpack.c.l.b16 %v344
      %v384 = vunpack.c.l.b16 %v345
      %v385 = vunpack.c.l.b16 %v346
      %v386 = vunpack.c.l.b16 %v347
      %v387 = vunpack.c.l.b16 %v348
      %v388 = vunpack.c.l.b16 %v349
      %v389 = vunpack.c.l.b16 %v350
      %v390 = vunpack.c.l.b16 %v351
      %v391 = vunpack.c.l.b16 %v352
      %v392 = vunpack.c.l.b16 %v353
      %v393 = vunpack.c.l.b16 %v354
      %v394 = vunpack.c.l.b16 %v355
      %v395 = vpack.c.b16 %v380, %v379
      %v396 = vpack.c.b16 %v382, %v381
      %v397 = vpack.c.b16 %v384, %v383
      %v398 = vpack.c.b16 %v386, %v385
      %v399 = vpack.c.b16 %v388, %v387
      %v400 = vpack.c.b16 %v390, %v389
      %v401 = vpack.c.b16 %v392, %v391
      %v402 = vpack.c.b16 %v394, %v393
      %411 = vmatprep.subr.bf16.mxu0 0
      %412 = vmatpush1.bf16.msra.mxu0 %v395
      %413 = vmatprep.subr.bf16.mxu0 0
      %414 = vmatpush1.bf16.msra.mxu0 %v396
      %415 = vmatprep.subr.bf16.mxu0 0
      %416 = vmatpush1.bf16.msra.mxu0 %v397
      %417 = vmatprep.subr.bf16.mxu0 0
      %418 = vmatpush1.bf16.msra.mxu0 %v398
      %419 = vmatprep.subr.bf16.mxu0 0
      %420 = vmatpush1.bf16.msra.mxu0 %v399
      %421 = vmatprep.subr.bf16.mxu0 0
      %422 = vmatpush1.bf16.msra.mxu0 %v400
      %423 = vmatprep.subr.bf16.mxu0 0
      %424 = vmatpush1.bf16.msra.mxu0 %v401
      %425 = vmatprep.subr.bf16.mxu0 0
      %426 = vmatpush1.bf16.msra.mxu0 %v402
      %427 = vmatprep.subr.bf16.mxu0 0
      %428 = vmatpush1.bf16.msra.mxu0 0
      %429 = vmatprep.subr.bf16.mxu0 0
      %430 = vmatpush1.bf16.msra.mxu0 0
      %431 = vmatprep.subr.bf16.mxu0 0
      %432 = vmatpush1.bf16.msra.mxu0 0
      %433 = vmatprep.subr.bf16.mxu0 0
      %434 = vmatpush1.bf16.msra.mxu0 0
      %435 = vmatprep.subr.bf16.mxu0 0
      %436 = vmatpush1.bf16.msra.mxu0 0
      %437 = vmatprep.subr.bf16.mxu0 0
      %438 = vmatpush1.bf16.msra.mxu0 0
      %439 = vmatprep.subr.bf16.mxu0 0
      %440 = vmatpush1.bf16.msra.mxu0 0
      %441 = vmatprep.subr.bf16.mxu0 0
      %442 = vmatpush1.bf16.msra.mxu0 0
      %443 = vmatprep.mubr.bf16.mxu0 0
      %444 = vmatmul.mubr.bf16.gmra.mrb[0].mxu0 %v339
      %v445 = vpop.f32.mrb[0].mxu0
      %v446 = vadd.f32 %v361, %v445
      %v447 = vpop.f32.mrb[0].mxu0
      %v448 = vpop.f32.mrb[0].mxu0
      %v449 = vadd.f32 %v361, %v448
      %v450 = vpop.f32.mrb[0].mxu0
      %451 = vdwg.mxu0
      %452 = vst [vmem:[#allocation11] sm:$0xff] %v446
      %453 = vst [vmem:[#allocation11 + $0x8] sm:$0xff] %v449
    $region53: #{tpu_custom_call.1} parent=1 // pred_fallthru
      _
    // Predicated region
    $region54: #{tpu_custom_call.1} parent=1 // pred_check
      _
    $region55: #{tpu_custom_call.1} parent=1 // pred_check_branch
      %455 = sbr.rel (0) target = $region57
    $region56: #{tpu_custom_call.1} parent=1 // pred_region
      %s457 = ssub.s32 256, 256
      %458 = vsyncadd [#allocation5], %s457
      %s459 = sshll.u32 [#allocation11], 4
      %s460 = int_to_ptr.vmem [resolvable:$true] %s459
      %465 = dma.vmem_to_hbm [thread:$0]  %s460, 256, %s7, [#allocation5], 128, 128, 8
    $region57: #{tpu_custom_call.1} parent=1 // pred_fallthru
      _
    // Predicated region
    $region58: #{tpu_custom_call.1} parent=1 // pred_check
      _
    $region59: #{tpu_custom_call.1} parent=1 // pred_check_branch
      %467 = sbr.rel (0) target = $region61
    $region60: #{tpu_custom_call.1} parent=1 // pred_region
      %468 = dma.done [#allocation5], 256
    $region61: #{tpu_custom_call.1} parent=1 // pred_fallthru
      _
    %469 = vsyncpa [#allocation4], 1
    %470 = vsyncpa [#allocation7], 1
    %471 = vsyncpa [#allocation10], 1
    %472 = vsyncpa [#allocation5], 1

</llo_original>
